<compile_context>
chip_gen: v6e
topology: v6e:2x2x1
jax: 0.10.0
libtpu: 0.0.40
codegen_flags: <defaults>
</compile_context>

<pallas_src>
import jax
import jax.numpy as jnp
from jax.experimental import pallas as pl
from jax.experimental.pallas import tpu as pltpu

_NEG_BIG = -1e30  # finite "-inf" for padded softmax columns (avoids inf-inf NaN)


def _node_proj_kernel(x_ref, w_att_ref, b_att_ref, w_al_ref, b_al_ref,
                      h_ref, a_ref):
    """Per node-row tile: h = LeakyReLU(x @ W_att + b_att), a = x @ w_align + b_align."""
    x = x_ref[...]
    z = jnp.dot(x, w_att_ref[...], preferred_element_type=jnp.float32) + b_att_ref[...]
    h_ref[...] = jnp.where(z > 0.0, z, 0.01 * z)           # LeakyReLU(0.01)
    # align: Linear(dim -> 1) as VPU multiply + lane reduction (avoids an MXU
    # matmul with a width-1 output).
    a_ref[...] = jnp.sum(x * w_al_ref[...], axis=1, keepdims=True) + b_al_ref[...]


def _pool_kernel(mnm_ref, mask_ref, a_ref, h_ref, pooled_ref, weight_ref):
    """Per molecule-row tile: w = softmax(mnm * a^T + mask, axis=1); out = w @ h."""
    s = mnm_ref[...] * a_ref[...] + mask_ref[...]          # [TM, Np]
    m = jnp.max(s, axis=1, keepdims=True)
    p = jnp.exp(s - m)
    l = jnp.sum(p, axis=1, keepdims=True)
    w = p / l
    weight_ref[...] = w
    pooled_ref[...] = jnp.dot(w, h_ref[...], preferred_element_type=jnp.float32)


def _round_up(x, m):
    return ((x + m - 1) // m) * m


def attentive_pooling(node_features, mol_node_matrix, mol_node_mask,
                      w_attend, b_attend, w_align, b_align):
    """Fused AttentivePooling forward. Weights are in [in, out] layout (PyTorch W^T)."""
    n, dim = node_features.shape
    m = mol_node_matrix.shape[0]
    out_dim = w_attend.shape[1]

    f32 = jnp.float32
    d_p = _round_up(dim, 128)                 # lane-pad feature dims
    o_p = _round_up(out_dim, 128)
    n_p = _round_up(n, 128)                   # node axis (lane axis of mnm/mask/weight)
    tm = 128                                  # molecule-row tile
    m_p = _round_up(m, tm)
    tn = 256 if n_p % 256 == 0 else 128       # node-row tile (MXU-wide)

    # --- zero/-inf padded operands (padding is provably inert, see kernel B mask) ---
    x = jnp.zeros((n_p, d_p), f32).at[:n, :dim].set(node_features.astype(f32))
    w_att = jnp.zeros((d_p, o_p), f32).at[:dim, :out_dim].set(w_attend.astype(f32))
    b_att = jnp.zeros((1, o_p), f32).at[0, :out_dim].set(b_attend.astype(f32))
    w_al = jnp.zeros((1, d_p), f32).at[0, :dim].set(jnp.reshape(w_align, (-1,)).astype(f32))
    b_al = jnp.reshape(jnp.asarray(b_align, f32), (1, 1))

    mnm = jnp.zeros((m_p, n_p), f32).at[:m, :n].set(mol_node_matrix.astype(f32))
    mask = jnp.full((m_p, n_p), _NEG_BIG, f32).at[:m, :n].set(mol_node_mask.astype(f32))

    # ---- kernel A: per-node projections (grid over node-row tiles) ----------------
    proj_cost = pl.CostEstimate(
        flops=2 * n_p * d_p * o_p + 4 * n_p * d_p,
        transcendentals=0,
        bytes_accessed=4 * (n_p * d_p + d_p * o_p + n_p * o_p + n_p + d_p + o_p),
    )
    h, a = pl.pallas_call(
        _node_proj_kernel,
        out_shape=(jax.ShapeDtypeStruct((n_p, o_p), f32),
                   jax.ShapeDtypeStruct((n_p, 1), f32)),
        grid=(n_p // tn,),
        in_specs=[
            pl.BlockSpec((tn, d_p), lambda i: (i, 0)),
            pl.BlockSpec((d_p, o_p), lambda i: (0, 0)),
            pl.BlockSpec((1, o_p), lambda i: (0, 0)),
            pl.BlockSpec((1, d_p), lambda i: (0, 0)),
            pl.BlockSpec((1, 1), lambda i: (0, 0)),
        ],
        out_specs=(
            pl.BlockSpec((tn, o_p), lambda i: (i, 0)),
            pl.BlockSpec((tn, 1), lambda i: (i, 0)),
        ),
        compiler_params=pltpu.CompilerParams(dimension_semantics=("parallel",)),
        cost_estimate=proj_cost,
    )(x, w_att, b_att, w_al, b_al)

    a_row = a.reshape(1, n_p)  # [1, Np] lane-major so it broadcasts across columns

    # ---- kernel B: fused scale + mask + softmax + pooling (grid over molecule tiles) ----
    pool_cost = pl.CostEstimate(
        flops=2 * m_p * n_p * o_p + 6 * m_p * n_p,
        transcendentals=m_p * n_p,
        bytes_accessed=4 * (3 * m_p * n_p + n_p * o_p + m_p * o_p + n_p),
    )
    pooled, weight = pl.pallas_call(
        _pool_kernel,
        out_shape=(jax.ShapeDtypeStruct((m_p, o_p), f32),
                   jax.ShapeDtypeStruct((m_p, n_p), f32)),
        grid=(m_p // tm,),
        in_specs=[
            pl.BlockSpec((tm, n_p), lambda i: (i, 0)),
            pl.BlockSpec((tm, n_p), lambda i: (i, 0)),
            pl.BlockSpec((1, n_p), lambda i: (0, 0)),
            pl.BlockSpec((n_p, o_p), lambda i: (0, 0)),
        ],
        out_specs=(
            pl.BlockSpec((tm, o_p), lambda i: (i, 0)),
            pl.BlockSpec((tm, n_p), lambda i: (i, 0)),
        ),
        compiler_params=pltpu.CompilerParams(dimension_semantics=("parallel",)),
        cost_estimate=pool_cost,
    )(mnm, mask, a_row, h)

    return pooled[:m, :out_dim], weight[:m, :n]


if __name__ == "__main__":
    # Small shapes consistent with the module: M molecules, N nodes, dim features.
    M, N, DIM, OUT_DIM = 3, 16, 32, 32

    key = jax.random.PRNGKey(0)
    kx, kw1, kb1, kw2, kb2 = jax.random.split(key, 5)

    node_features = jax.random.normal(kx, (N, DIM), dtype=jnp.float32)

    # Membership matrix: node i belongs to molecule i % M; mask 0 / -1e9.
    owner = jnp.arange(N) % M
    mol_node_matrix = (owner[None, :] == jnp.arange(M)[:, None]).astype(jnp.float32)
    mol_node_mask = jnp.where(mol_node_matrix > 0, 0.0, -1e9).astype(jnp.float32)

    # Linear parameters in [in, out] layout (PyTorch weight^T).
    w_attend = jax.random.normal(kw1, (DIM, OUT_DIM), dtype=jnp.float32) * 0.1
    b_attend = jax.random.normal(kb1, (OUT_DIM,), dtype=jnp.float32) * 0.1
    w_align = jax.random.normal(kw2, (DIM, 1), dtype=jnp.float32) * 0.1
    b_align = jax.random.normal(kb2, (), dtype=jnp.float32) * 0.1

    pooled, weight = attentive_pooling(node_features, mol_node_matrix,
                                       mol_node_mask, w_attend, b_attend,
                                       w_align, b_align)
    jax.block_until_ready((pooled, weight))

    # Pure-JAX reference matching the PyTorch module exactly.
    h_ref = node_features @ w_attend + b_attend
    h_ref = jnp.where(h_ref > 0, h_ref, 0.01 * h_ref)      # LeakyReLU(0.01)
    a_ref = node_features @ w_align + b_align               # [N, 1]
    d_ref = jnp.diag(a_ref.reshape(-1))
    s_ref = mol_node_matrix @ d_ref + mol_node_mask
    w_ref = jax.nn.softmax(s_ref, axis=1)
    pooled_ref = w_ref @ h_ref

    assert pooled.shape == (M, OUT_DIM) and weight.shape == (M, N)
    assert jnp.allclose(pooled, pooled_ref, atol=1e-4, rtol=1e-4)
    assert jnp.allclose(weight, w_ref, atol=1e-4, rtol=1e-4)

    print("KERNEL_OK")
</pallas_src>

<mosaic_0001>
module attributes {stable_mosaic.version = 11 : i64} {
  func.func @_node_proj_kernel(%arg0: i32, %arg1: memref<128x128xf32, #tpu.memory_space<vmem>>, %arg2: memref<128x128xf32, #tpu.memory_space<vmem>>, %arg3: memref<1x128xf32, #tpu.memory_space<vmem>>, %arg4: memref<1x128xf32, #tpu.memory_space<vmem>>, %arg5: memref<1x1xf32, #tpu.memory_space<vmem>>, %arg6: memref<128x128xf32, #tpu.memory_space<vmem>>, %arg7: memref<128x1xf32, #tpu.memory_space<vmem>>) attributes {dimension_semantics = [#tpu.dimension_semantics<parallel>], iteration_bounds = array<i64: 1>, scalar_prefetch = 0 : i64, scratch_operands = 0 : i64, tpu.core_type = #tpu.core_type<tc>, window_params = [{transform_indices = @transform_0, window_bounds = array<i64: 128, 128>}, {pipeline_mode = #tpu.pipeline_mode<synchronous>, transform_indices = @transform_1, window_bounds = array<i64: 128, 128>}, {pipeline_mode = #tpu.pipeline_mode<synchronous>, transform_indices = @transform_2, window_bounds = array<i64: 1, 128>}, {pipeline_mode = #tpu.pipeline_mode<synchronous>, transform_indices = @transform_3, window_bounds = array<i64: 1, 128>}, {pipeline_mode = #tpu.pipeline_mode<synchronous>, transform_indices = @transform_4, window_bounds = array<i64: 1, 1>}, {transform_indices = @transform_5, window_bounds = array<i64: 128, 128>}, {transform_indices = @transform_6, window_bounds = array<i64: 128, 1>}]} {
    %c0 = arith.constant 0 : index
    %c0_0 = arith.constant 0 : index
    %0 = vector.load %arg1[%c0, %c0_0] : memref<128x128xf32, #tpu.memory_space<vmem>>, vector<128x128xf32>
    %c0_1 = arith.constant 0 : index
    %c0_2 = arith.constant 0 : index
    %1 = vector.load %arg2[%c0_1, %c0_2] : memref<128x128xf32, #tpu.memory_space<vmem>>, vector<128x128xf32>
    %cst = arith.constant dense<0.000000e+00> : vector<128x128xf32>
    %2 = tpu.matmul %0, %1, %cst {dimension_numbers = #tpu.dot_dimension_numbers<[1], [0], [0], [1], [0, 0, 1, 1], [], []>} : vector<128x128xf32>, vector<128x128xf32>, vector<128x128xf32> -> vector<128x128xf32>
    %c0_3 = arith.constant 0 : index
    %c0_4 = arith.constant 0 : index
    %3 = vector.load %arg3[%c0_3, %c0_4] : memref<1x128xf32, #tpu.memory_space<vmem>>, vector<1x128xf32>
    %4 = vector.broadcast %3 : vector<1x128xf32> to vector<128x128xf32>
    %5 = arith.addf %2, %4 : vector<128x128xf32>
    %cst_5 = arith.constant 0.000000e+00 : f32
    %6 = vector.broadcast %cst_5 : f32 to vector<128x128xf32>
    %7 = arith.cmpf ogt, %5, %6 : vector<128x128xf32>
    %cst_6 = arith.constant 0.00999999977 : f32
    %8 = vector.broadcast %cst_6 : f32 to vector<128x128xf32>
    %9 = arith.mulf %8, %5 : vector<128x128xf32>
    %10 = arith.select %7, %5, %9 : vector<128x128xi1>, vector<128x128xf32>
    %c0_7 = arith.constant 0 : index
    %c0_8 = arith.constant 0 : index
    %11 = vector.load %arg6[%c0_7, %c0_8] : memref<128x128xf32, #tpu.memory_space<vmem>>, vector<128x128xf32>
    tpu.vector_store %arg6[%c0_7, %c0_8], %10 {strides = array<i32>} : memref<128x128xf32, #tpu.memory_space<vmem>>, vector<128x128xf32>,
    %c0_9 = arith.constant 0 : index
    %c0_10 = arith.constant 0 : index
    %12 = vector.load %arg4[%c0_9, %c0_10] : memref<1x128xf32, #tpu.memory_space<vmem>>, vector<1x128xf32>
    %13 = vector.broadcast %12 : vector<1x128xf32> to vector<128x128xf32>
    %14 = arith.mulf %0, %13 : vector<128x128xf32>
    %cst_11 = arith.constant dense<0.000000e+00> : vector<128xf32>
    %15 = vector.multi_reduction <add>, %14, %cst_11 [1] : vector<128x128xf32> to vector<128xf32>
    %16 = vector.shape_cast %15 : vector<128xf32> to vector<128x1xf32>
    %c0_12 = arith.constant 0 : index
    %c0_13 = arith.constant 0 : index
    %17 = vector.load %arg5[%c0_12, %c0_13] : memref<1x1xf32, #tpu.memory_space<vmem>>, vector<1x1xf32>
    %18 = vector.broadcast %17 : vector<1x1xf32> to vector<128x1xf32>
    %19 = arith.addf %16, %18 : vector<128x1xf32>
    %c0_14 = arith.constant 0 : index
    %c0_15 = arith.constant 0 : index
    %20 = vector.load %arg7[%c0_14, %c0_15] : memref<128x1xf32, #tpu.memory_space<vmem>>, vector<128x1xf32>
    tpu.vector_store %arg7[%c0_14, %c0_15], %19 {strides = array<i32>} : memref<128x1xf32, #tpu.memory_space<vmem>>, vector<128x1xf32>,
    return
  }
  func.func @transform_0(%arg0: i32) -> (i32, i32) {
    %c0_i32 = arith.constant 0 : i32
    %c0_i32_0 = arith.constant 0 : i32
    return %arg0, %c0_i32 : i32, i32
  }
  func.func @transform_1(%arg0: i32) -> (i32, i32) {
    %c0_i32 = arith.constant 0 : i32
    %c0_i32_0 = arith.constant 0 : i32
    %c0_i32_1 = arith.constant 0 : i32
    return %c0_i32, %c0_i32_0 : i32, i32
  }
  func.func @transform_2(%arg0: i32) -> (i32, i32) {
    %c0_i32 = arith.constant 0 : i32
    %c0_i32_0 = arith.constant 0 : i32
    %c0_i32_1 = arith.constant 0 : i32
    return %c0_i32, %c0_i32_0 : i32, i32
  }
  func.func @transform_3(%arg0: i32) -> (i32, i32) {
    %c0_i32 = arith.constant 0 : i32
    %c0_i32_0 = arith.constant 0 : i32
    %c0_i32_1 = arith.constant 0 : i32
    return %c0_i32, %c0_i32_0 : i32, i32
  }
  func.func @transform_4(%arg0: i32) -> (i32, i32) {
    %c0_i32 = arith.constant 0 : i32
    %c0_i32_0 = arith.constant 0 : i32
    %c0_i32_1 = arith.constant 0 : i32
    return %c0_i32, %c0_i32_0 : i32, i32
  }
  func.func @transform_5(%arg0: i32) -> (i32, i32) {
    %c0_i32 = arith.constant 0 : i32
    %c0_i32_0 = arith.constant 0 : i32
    return %arg0, %c0_i32 : i32, i32
  }
  func.func @transform_6(%arg0: i32) -> (i32, i32) {
    %c0_i32 = arith.constant 0 : i32
    %c0_i32_0 = arith.constant 0 : i32
    return %arg0, %c0_i32 : i32, i32
  }
}

</mosaic_0001>

<llo_original>
// kernel: tpu_custom_call.1
$region0: #{tpu_custom_call.1}
  #allocation0 [shape = 'u32[]', space=smem, size = 0x4, offset = 0x4, fixed_abs, tag = 'smem constant byte address 0x4 - core index']
  #allocation1 [shape = 'u32[144,128]{1,0:T(1,128)}', space=vmem, size = 0x12000, scoped, tag = 'internal scratch']
  #allocation2 [shape = 'f32[1,1]{1,0:T(1,128)S(1)}', space=vmem, size = 0x200, scoped, tag = 'scoped memory for tpu_custom_call.1']
  %s0 = inlined_call_operand.hbm [shape: f32[128,128], index: 0, kind: input, shape index: {}]
  %s1 = inlined_call_operand.hbm [shape: f32[128,128], index: 1, kind: input, shape index: {}]
  %s2 = inlined_call_operand.vmem [shape: f32[1,128], index: 2, kind: input, shape index: {}]
  %s3 = inlined_call_operand.vmem [shape: f32[1,128], index: 3, kind: input, shape index: {}]
  %s4 = inlined_call_operand.<no memory space> [shape: f32[1,1], index: 4, kind: input, shape index: {}]
  %s5 = inlined_call_operand.hbm [shape: f32[128,128], index: 5, kind: output, shape index: {0}]
  %s6 = inlined_call_operand.vmem [shape: f32[128,1], index: 6, kind: output, shape index: {1}]
  %7 = xla_tuple %s5, %s6
  %s8 = sld [smem:[#allocation0]]
  $region46: #{tpu_custom_call.1} parent=0
    _
  %s10 = ssub.s32 1, %s8
  %s11 = scalar_select 0, %s10, %s8
  %v12 = vstv %s4
  %13 = vst [vmem:[#allocation2] sm:$0x1] %v12
  $region1: #{tpu_custom_call.1} parent=0
    #allocation3 [shape = 'u8[65536]{0}', space=vmem, size = 0x10000, scoped, tag = 'input window, operand 0, single buffered']
    #allocation4 [shape = 's32[1]{0}', space=sflag, size = 0x4, scoped, tag = 'scoped memory for tpu_custom_call.1']
    #allocation5 [shape = 's32[1]{0}', space=sflag, size = 0x4, scoped, tag = 'scoped memory for tpu_custom_call.1']
    #allocation6 [shape = 'u8[65536]{0}', space=vmem, size = 0x10000, scoped, tag = 'input window, operand 1, single buffered']
    #allocation7 [shape = 's32[1]{0}', space=sflag, size = 0x4, scoped, tag = 'scoped memory for tpu_custom_call.1']
    #allocation8 [shape = 'u8[65536]{0}', space=vmem, size = 0x10000, scoped, tag = 'output window, operand 0, single buffered']
    %14 = vsyncpa [#allocation4], 0
    %15 = vsyncpa [#allocation7], 0
    %16 = vsyncpa [#allocation5], 0
    // Predicated region
    $region2: #{tpu_custom_call.1} parent=1 // pred_check
      _
    $region3: #{tpu_custom_call.1} parent=1 // pred_check_branch
      %18 = sbr.rel (0) target = $region5
    $region4: #{tpu_custom_call.1} parent=1 // pred_region
      %s20 = ssub.s32 2048, 2048
      %21 = vsyncadd [#allocation4], %s20
      %s22 = sshll.u32 [#allocation3], 4
      %s23 = int_to_ptr.vmem [resolvable:$true] %s22
      %28 = dma.hbm_to_vmem [thread:$0]  %s0, 2048, %s23, [#allocation4], 128, 128, 8
    $region5: #{tpu_custom_call.1} parent=1 // pred_fallthru
      _
    // Predicated region
    $region6: #{tpu_custom_call.1} parent=1 // pred_check
      _
    $region7: #{tpu_custom_call.1} parent=1 // pred_check_branch
      %30 = sbr.rel (0) target = $region9
    $region8: #{tpu_custom_call.1} parent=1 // pred_region
      %s32 = ssub.s32 2048, 2048
      %33 = vsyncadd [#allocation7], %s32
      %s34 = sshll.u32 [#allocation6], 4
      %s35 = int_to_ptr.vmem [resolvable:$true] %s34
      %40 = dma.hbm_to_vmem [thread:$0]  %s1, 2048, %s35, [#allocation7], 128, 128, 8
    $region9: #{tpu_custom_call.1} parent=1 // pred_fallthru
      _
    // Predicated region
    $region10: #{tpu_custom_call.1} parent=1 // pred_check
      _
    $region11: #{tpu_custom_call.1} parent=1 // pred_check_branch
      %42 = sbr.rel (0) target = $region13
    $region12: #{tpu_custom_call.1} parent=1 // pred_region
      _
    $region13: #{tpu_custom_call.1} parent=1 // pred_fallthru
      _
    // Predicated region
    $region14: #{tpu_custom_call.1} parent=1 // pred_check
      _
    $region15: #{tpu_custom_call.1} parent=1 // pred_check_branch
      %44 = sbr.rel (0) target = $region17
    $region16: #{tpu_custom_call.1} parent=1 // pred_region
      _
    $region17: #{tpu_custom_call.1} parent=1 // pred_fallthru
      _
    // Predicated region
    $region18: #{tpu_custom_call.1} parent=1 // pred_check
      _
    $region19: #{tpu_custom_call.1} parent=1 // pred_check_branch
      %46 = sbr.rel (0) target = $region21
    $region20: #{tpu_custom_call.1} parent=1 // pred_region
      _
    $region21: #{tpu_custom_call.1} parent=1 // pred_fallthru
      _
    // Predicated region
    $region22: #{tpu_custom_call.1} parent=1 // pred_check
      _
    $region23: #{tpu_custom_call.1} parent=1 // pred_check_branch
      %48 = sbr.rel (0) target = $region25
    $region24: #{tpu_custom_call.1} parent=1 // pred_region
      %49 = dma.done [#allocation4], 2048
    $region25: #{tpu_custom_call.1} parent=1 // pred_fallthru
      _
    // Predicated region
    $region26: #{tpu_custom_call.1} parent=1 // pred_check
      _
    $region27: #{tpu_custom_call.1} parent=1 // pred_check_branch
      %51 = sbr.rel (0) target = $region29
    $region28: #{tpu_custom_call.1} parent=1 // pred_region
      %52 = dma.done [#allocation7], 2048
    $region29: #{tpu_custom_call.1} parent=1 // pred_fallthru
      _
    %v53 = vld [vmem:[#allocation3] sm:$0xff]
    %v54 = vld [vmem:[#allocation3 + $0x8] sm:$0xff]
    %v55 = vld [vmem:[#allocation3 + $0x10] sm:$0xff]
    %v56 = vld [vmem:[#allocation3 + $0x18] sm:$0xff]
    %v57 = vld [vmem:[#allocation3 + $0x20] sm:$0xff]
    %v58 = vld [vmem:[#allocation3 + $0x28] sm:$0xff]
    %v59 = vld [vmem:[#allocation3 + $0x30] sm:$0xff]
    %v60 = vld [vmem:[#allocation3 + $0x38] sm:$0xff]
    %v61 = vld [vmem:[#allocation3 + $0x40] sm:$0xff]
    %v62 = vld [vmem:[#allocation3 + $0x48] sm:$0xff]
    %v63 = vld [vmem:[#allocation3 + $0x50] sm:$0xff]
    %v64 = vld [vmem:[#allocation3 + $0x58] sm:$0xff]
    %v65 = vld [vmem:[#allocation3 + $0x60] sm:$0xff]
    %v66 = vld [vmem:[#allocation3 + $0x68] sm:$0xff]
    %v67 = vld [vmem:[#allocation3 + $0x70] sm:$0xff]
    %v68 = vld [vmem:[#allocation3 + $0x78] sm:$0xff]
    %v69 = vld [vmem:[#allocation6] sm:$0xff]
    %v70 = vld [vmem:[#allocation6 + $0x8] sm:$0xff]
    %v71 = vld [vmem:[#allocation6 + $0x10] sm:$0xff]
    %v72 = vld [vmem:[#allocation6 + $0x18] sm:$0xff]
    %v73 = vld [vmem:[#allocation6 + $0x20] sm:$0xff]
    %v74 = vld [vmem:[#allocation6 + $0x28] sm:$0xff]
    %v75 = vld [vmem:[#allocation6 + $0x30] sm:$0xff]
    %v76 = vld [vmem:[#allocation6 + $0x38] sm:$0xff]
    %v77 = vld [vmem:[#allocation6 + $0x40] sm:$0xff]
    %v78 = vld [vmem:[#allocation6 + $0x48] sm:$0xff]
    %v79 = vld [vmem:[#allocation6 + $0x50] sm:$0xff]
    %v80 = vld [vmem:[#allocation6 + $0x58] sm:$0xff]
    %v81 = vld [vmem:[#allocation6 + $0x60] sm:$0xff]
    %v82 = vld [vmem:[#allocation6 + $0x68] sm:$0xff]
    %v83 = vld [vmem:[#allocation6 + $0x70] sm:$0xff]
    %v84 = vld [vmem:[#allocation6 + $0x78] sm:$0xff]
    %v85 = vld [vmem:[%s2] sm:$0x1]
    %v87 = vlaneseq
    %v88 = vshrl.u32 %v87, 7
    %v89 = vsub.s32 0, %v88
    %v90 = vrot.slane %v85, %v89
    %92 = vmatprep.subr.mxu0 0.0
    %93 = vmatpush1.msra.mxu0 %v84
    %94 = vmatprep.subr.mxu0 0.0
    %95 = vmatpush1.msra.mxu0 %v83
    %96 = vmatprep.subr.mxu0 0.0
    %97 = vmatpush1.msra.mxu0 %v82
    %98 = vmatprep.subr.mxu0 0.0
    %99 = vmatpush1.msra.mxu0 %v81
    %100 = vmatprep.subr.mxu0 0.0
    %101 = vmatpush1.msra.mxu0 %v80
    %102 = vmatprep.subr.mxu0 0.0
    %103 = vmatpush1.msra.mxu0 %v79
    %104 = vmatprep.subr.mxu0 0.0
    %105 = vmatpush1.msra.mxu0 %v78
    %106 = vmatprep.subr.mxu0 0.0
    %107 = vmatpush1.msra.mxu0 %v77
    %108 = vmatprep.subr.mxu0 0.0
    %109 = vmatpush1.msra.mxu0 %v76
    %110 = vmatprep.subr.mxu0 0.0
    %111 = vmatpush1.msra.mxu0 %v75
    %112 = vmatprep.subr.mxu0 0.0
    %113 = vmatpush1.msra.mxu0 %v74
    %114 = vmatprep.subr.mxu0 0.0
    %115 = vmatpush1.msra.mxu0 %v73
    %116 = vmatprep.subr.mxu0 0.0
    %117 = vmatpush1.msra.mxu0 %v72
    %118 = vmatprep.subr.mxu0 0.0
    %119 = vmatpush1.msra.mxu0 %v71
    %120 = vmatprep.subr.mxu0 0.0
    %121 = vmatpush1.msra.mxu0 %v70
    %122 = vmatprep.subr.mxu0 0.0
    %123 = vmatpush1.msra.mxu0 %v69
    %124 = vmatprep.subr.mxu0 0.0
    %125 = vmatpush2.msra.mxu0 0.0
    %126 = vmatprep.subr.mxu0 0.0
    %127 = vmatpush2.msra.mxu0 0.0
    %128 = vmatprep.subr.mxu0 0.0
    %129 = vmatpush2.msra.mxu0 0.0
    %130 = vmatprep.subr.mxu0 0.0
    %131 = vmatpush2.msra.mxu0 0.0
    %132 = vmatprep.subr.mxu0 0.0
    %133 = vmatpush2.msra.mxu0 0.0
    %134 = vmatprep.subr.mxu0 0.0
    %135 = vmatpush2.msra.mxu0 0.0
    %136 = vmatprep.subr.mxu0 0.0
    %137 = vmatpush2.msra.mxu0 0.0
    %138 = vmatprep.subr.mxu0 0.0
    %139 = vmatpush2.msra.mxu0 0.0
    %140 = vmatprep.subr.mxu0 0.0
    %141 = vmatpush2.msra.mxu0 0.0
    %142 = vmatprep.subr.mxu0 0.0
    %143 = vmatpush2.msra.mxu0 0.0
    %144 = vmatprep.subr.mxu0 0.0
    %145 = vmatpush2.msra.mxu0 0.0
    %146 = vmatprep.subr.mxu0 0.0
    %147 = vmatpush2.msra.mxu0 0.0
    %148 = vmatprep.subr.mxu0 0.0
    %149 = vmatpush2.msra.mxu0 0.0
    %150 = vmatprep.subr.mxu0 0.0
    %151 = vmatpush2.msra.mxu0 0.0
    %152 = vmatprep.subr.mxu0 0.0
    %153 = vmatpush2.msra.mxu0 0.0
    %154 = vmatprep.subr.mxu0 0.0
    %155 = vmatpush2.msra.mxu0 0.0
    %156 = vmatprep.mubr.f32.mxu0 0.0
    %157 = vmatmul.mubr.f32.gmra.mxu0 %v53
    %v158 = vpop.f32.mrf.mxu0
    %v159 = vadd.f32 %v90, %v158
    %v160 = vpop.f32.mrf.mxu0
    %161 = vmatprep.mubr.f32.mxu0 0.0
    %162 = vmatmul.mubr.f32.gmra.mxu0 %v54
    %v163 = vpop.f32.mrf.mxu0
    %v164 = vadd.f32 %v90, %v163
    %v165 = vpop.f32.mrf.mxu0
    %166 = vmatprep.mubr.f32.mxu0 0.0
    %167 = vmatmul.mubr.f32.gmra.mxu0 %v55
    %v168 = vpop.f32.mrf.mxu0
    %v169 = vadd.f32 %v90, %v168
    %v170 = vpop.f32.mrf.mxu0
    %171 = vmatprep.mubr.f32.mxu0 0.0
    %172 = vmatmul.mubr.f32.gmra.mxu0 %v56
    %v173 = vpop.f32.mrf.mxu0
    %v174 = vadd.f32 %v90, %v173
    %v175 = vpop.f32.mrf.mxu0
    %176 = vmatprep.mubr.f32.mxu0 0.0
    %177 = vmatmul.mubr.f32.gmra.mxu0 %v57
    %v178 = vpop.f32.mrf.mxu0
    %v179 = vadd.f32 %v90, %v178
    %v180 = vpop.f32.mrf.mxu0
    %181 = vmatprep.mubr.f32.mxu0 0.0
    %182 = vmatmul.mubr.f32.gmra.mxu0 %v58
    %v183 = vpop.f32.mrf.mxu0
    %v184 = vadd.f32 %v90, %v183
    %v185 = vpop.f32.mrf.mxu0
    %186 = vmatprep.mubr.f32.mxu0 0.0
    %187 = vmatmul.mubr.f32.gmra.mxu0 %v59
    %v188 = vpop.f32.mrf.mxu0
    %v189 = vadd.f32 %v90, %v188
    %v190 = vpop.f32.mrf.mxu0
    %191 = vmatprep.mubr.f32.mxu0 0.0
    %192 = vmatmul.mubr.f32.gmra.mxu0 %v60
    %v193 = vpop.f32.mrf.mxu0
    %v194 = vadd.f32 %v90, %v193
    %v195 = vpop.f32.mrf.mxu0
    %196 = vmatprep.mubr.f32.mxu0 0.0
    %197 = vmatmul.mubr.f32.gmra.mxu0 %v61
    %v198 = vpop.f32.mrf.mxu0
    %v199 = vadd.f32 %v90, %v198
    %v200 = vpop.f32.mrf.mxu0
    %201 = vmatprep.mubr.f32.mxu0 0.0
    %202 = vmatmul.mubr.f32.gmra.mxu0 %v62
    %v203 = vpop.f32.mrf.mxu0
    %v204 = vadd.f32 %v90, %v203
    %v205 = vpop.f32.mrf.mxu0
    %206 = vmatprep.mubr.f32.mxu0 0.0
    %207 = vmatmul.mubr.f32.gmra.mxu0 %v63
    %v208 = vpop.f32.mrf.mxu0
    %v209 = vadd.f32 %v90, %v208
    %v210 = vpop.f32.mrf.mxu0
    %211 = vmatprep.mubr.f32.mxu0 0.0
    %212 = vmatmul.mubr.f32.gmra.mxu0 %v64
    %v213 = vpop.f32.mrf.mxu0
    %v214 = vadd.f32 %v90, %v213
    %v215 = vpop.f32.mrf.mxu0
    %216 = vmatprep.mubr.f32.mxu0 0.0
    %217 = vmatmul.mubr.f32.gmra.mxu0 %v65
    %v218 = vpop.f32.mrf.mxu0
    %v219 = vadd.f32 %v90, %v218
    %v220 = vpop.f32.mrf.mxu0
    %221 = vmatprep.mubr.f32.mxu0 0.0
    %222 = vmatmul.mubr.f32.gmra.mxu0 %v66
    %v223 = vpop.f32.mrf.mxu0
    %v224 = vadd.f32 %v90, %v223
    %v225 = vpop.f32.mrf.mxu0
    %226 = vmatprep.mubr.f32.mxu0 0.0
    %227 = vmatmul.mubr.f32.gmra.mxu0 %v67
    %v228 = vpop.f32.mrf.mxu0
    %v229 = vadd.f32 %v90, %v228
    %v230 = vpop.f32.mrf.mxu0
    %231 = vmatprep.mubr.f32.mxu0 0.0
    %232 = vmatmul.mubr.f32.gmra.mxu0 %v68
    %v233 = vpop.f32.mrf.mxu0
    %v234 = vadd.f32 %v90, %v233
    %v235 = vpop.f32.mrf.mxu0
    %236 = vdwg.mxu0
    %vm237 = vcmp.gt.f32.partialorder %v159, 0.0
    %vm238 = vcmp.gt.f32.partialorder %v164, 0.0
    %vm239 = vcmp.gt.f32.partialorder %v169, 0.0
    %vm240 = vcmp.gt.f32.partialorder %v174, 0.0
    %vm241 = vcmp.gt.f32.partialorder %v179, 0.0
    %vm242 = vcmp.gt.f32.partialorder %v184, 0.0
    %vm243 = vcmp.gt.f32.partialorder %v189, 0.0
    %vm244 = vcmp.gt.f32.partialorder %v194, 0.0
    %vm245 = vcmp.gt.f32.partialorder %v199, 0.0
    %vm246 = vcmp.gt.f32.partialorder %v204, 0.0
    %vm247 = vcmp.gt.f32.partialorder %v209, 0.0
    %vm248 = vcmp.gt.f32.partialorder %v214, 0.0
    %vm249 = vcmp.gt.f32.partialorder %v219, 0.0
    %vm250 = vcmp.gt.f32.partialorder %v224, 0.0
    %vm251 = vcmp.gt.f32.partialorder %v229, 0.0
    %vm252 = vcmp.gt.f32.partialorder %v234, 0.0
    %v253 = vmul.f32 %v159, 0.01
    %v254 = vmul.f32 %v164, 0.01
    %v255 = vmul.f32 %v169, 0.01
    %v256 = vmul.f32 %v174, 0.01
    %v257 = vmul.f32 %v179, 0.01
    %v258 = vmul.f32 %v184, 0.01
    %v259 = vmul.f32 %v189, 0.01
    %v260 = vmul.f32 %v194, 0.01
    %v261 = vmul.f32 %v199, 0.01
    %v262 = vmul.f32 %v204, 0.01
    %v263 = vmul.f32 %v209, 0.01
    %v264 = vmul.f32 %v214, 0.01
    %v265 = vmul.f32 %v219, 0.01
    %v266 = vmul.f32 %v224, 0.01
    %v267 = vmul.f32 %v229, 0.01
    %v268 = vmul.f32 %v234, 0.01
    %v269 = vsel %vm237, %v159, %v253
    %v270 = vsel %vm238, %v164, %v254
    %v271 = vsel %vm239, %v169, %v255
    %v272 = vsel %vm240, %v174, %v256
    %v273 = vsel %vm241, %v179, %v257
    %v274 = vsel %vm242, %v184, %v258
    %v275 = vsel %vm243, %v189, %v259
    %v276 = vsel %vm244, %v194, %v260
    %v277 = vsel %vm245, %v199, %v261
    %v278 = vsel %vm246, %v204, %v262
    %v279 = vsel %vm247, %v209, %v263
    %v280 = vsel %vm248, %v214, %v264
    %v281 = vsel %vm249, %v219, %v265
    %v282 = vsel %vm250, %v224, %v266
    %v283 = vsel %vm251, %v229, %v267
    %v284 = vsel %vm252, %v234, %v268
    %285 = vst [vmem:[#allocation8] sm:$0xff] %v269
    %286 = vst [vmem:[#allocation8 + $0x8] sm:$0xff] %v270
    %287 = vst [vmem:[#allocation8 + $0x10] sm:$0xff] %v271
    %288 = vst [vmem:[#allocation8 + $0x18] sm:$0xff] %v272
    %289 = vst [vmem:[#allocation8 + $0x20] sm:$0xff] %v273
    %290 = vst [vmem:[#allocation8 + $0x28] sm:$0xff] %v274
    %291 = vst [vmem:[#allocation8 + $0x30] sm:$0xff] %v275
    %292 = vst [vmem:[#allocation8 + $0x38] sm:$0xff] %v276
    %293 = vst [vmem:[#allocation8 + $0x40] sm:$0xff] %v277
    %294 = vst [vmem:[#allocation8 + $0x48] sm:$0xff] %v278
    %295 = vst [vmem:[#allocation8 + $0x50] sm:$0xff] %v279
    %296 = vst [vmem:[#allocation8 + $0x58] sm:$0xff] %v280
    %297 = vst [vmem:[#allocation8 + $0x60] sm:$0xff] %v281
    %298 = vst [vmem:[#allocation8 + $0x68] sm:$0xff] %v282
    %299 = vst [vmem:[#allocation8 + $0x70] sm:$0xff] %v283
    %300 = vst [vmem:[#allocation8 + $0x78] sm:$0xff] %v284
    %v301 = vld [vmem:[%s3] sm:$0x1]
    %v303 = vlaneseq
    %v304 = vshrl.u32 %v303, 7
    %v305 = vsub.s32 0, %v304
    %v306 = vrot.slane %v301, %v305
    %v308 = vmul.f32 %v53, %v306
    %v309 = vmul.f32 %v54, %v306
    %v310 = vmul.f32 %v55, %v306
    %v311 = vmul.f32 %v56, %v306
    %v312 = vmul.f32 %v57, %v306
    %v313 = vmul.f32 %v58, %v306
    %v314 = vmul.f32 %v59, %v306
    %v315 = vmul.f32 %v60, %v306
    %v316 = vmul.f32 %v61, %v306
    %v317 = vmul.f32 %v62, %v306
    %v318 = vmul.f32 %v63, %v306
    %v319 = vmul.f32 %v64, %v306
    %v320 = vmul.f32 %v65, %v306
    %v321 = vmul.f32 %v66, %v306
    %v322 = vmul.f32 %v67, %v306
    %v323 = vmul.f32 %v68, %v306
    %324 = vadd.xlane.f32.xlu0 %v308
    %v325 = vpop.xlane.xlu0 %324
    %326 = vadd.xlane.f32.xlu0 %v309
    %v327 = vpop.xlane.xlu0 %326
    %328 = vadd.xlane.f32.xlu0 %v310
    %v329 = vpop.xlane.xlu0 %328
    %330 = vadd.xlane.f32.xlu0 %v311
    %v331 = vpop.xlane.xlu0 %330
    %332 = vadd.xlane.f32.xlu0 %v312
    %v333 = vpop.xlane.xlu0 %332
    %334 = vadd.xlane.f32.xlu0 %v313
    %v335 = vpop.xlane.xlu0 %334
    %336 = vadd.xlane.f32.xlu0 %v314
    %v337 = vpop.xlane.xlu0 %336
    %338 = vadd.xlane.f32.xlu0 %v315
    %v339 = vpop.xlane.xlu0 %338
    %340 = vadd.xlane.f32.xlu0 %v316
    %v341 = vpop.xlane.xlu0 %340
    %342 = vadd.xlane.f32.xlu0 %v317
    %v343 = vpop.xlane.xlu0 %342
    %344 = vadd.xlane.f32.xlu0 %v318
    %v345 = vpop.xlane.xlu0 %344
    %346 = vadd.xlane.f32.xlu0 %v319
    %v347 = vpop.xlane.xlu0 %346
    %348 = vadd.xlane.f32.xlu0 %v320
    %v349 = vpop.xlane.xlu0 %348
    %350 = vadd.xlane.f32.xlu0 %v321
    %v351 = vpop.xlane.xlu0 %350
    %352 = vadd.xlane.f32.xlu0 %v322
    %v353 = vpop.xlane.xlu0 %352
    %354 = vadd.xlane.f32.xlu0 %v323
    %v355 = vpop.xlane.xlu0 %354
    %v356 = vld [vmem:[#allocation2] sm:$0x1]
    %v358 = vlaneseq
    %v359 = vshrl.u32 %v358, 7
    %v360 = vsub.s32 0, %v359
    %v361 = vrot.slane %v356, %v360
    %v363 = vadd.f32 %v325, %v361
    %v364 = vadd.f32 %v327, %v361
    %v365 = vadd.f32 %v329, %v361
    %v366 = vadd.f32 %v331, %v361
    %v367 = vadd.f32 %v333, %v361
    %v368 = vadd.f32 %v335, %v361
    %v369 = vadd.f32 %v337, %v361
    %v370 = vadd.f32 %v339, %v361
    %v371 = vadd.f32 %v341, %v361
    %v372 = vadd.f32 %v343, %v361
    %v373 = vadd.f32 %v345, %v361
    %v374 = vadd.f32 %v347, %v361
    %v375 = vadd.f32 %v349, %v361
    %v376 = vadd.f32 %v351, %v361
    %v377 = vadd.f32 %v353, %v361
    %v378 = vadd.f32 %v355, %v361
    %vm379 = vcmask 7168
    %380 = vst.msk [vmem:[%s6] sm:$0xff] %vm379, %v363
    %381 = vst.msk [vmem:[%s6 + $0x8] sm:$0xff] %vm379, %v364
    %382 = vst.msk [vmem:[%s6 + $0x10] sm:$0xff] %vm379, %v365
    %383 = vst.msk [vmem:[%s6 + $0x18] sm:$0xff] %vm379, %v366
    %384 = vst.msk [vmem:[%s6 + $0x20] sm:$0xff] %vm379, %v367
    %385 = vst.msk [vmem:[%s6 + $0x28] sm:$0xff] %vm379, %v368
    %386 = vst.msk [vmem:[%s6 + $0x30] sm:$0xff] %vm379, %v369
    %387 = vst.msk [vmem:[%s6 + $0x38] sm:$0xff] %vm379, %v370
    %388 = vst.msk [vmem:[%s6 + $0x40] sm:$0xff] %vm379, %v371
    %389 = vst.msk [vmem:[%s6 + $0x48] sm:$0xff] %vm379, %v372
    %390 = vst.msk [vmem:[%s6 + $0x50] sm:$0xff] %vm379, %v373
    %391 = vst.msk [vmem:[%s6 + $0x58] sm:$0xff] %vm379, %v374
    %392 = vst.msk [vmem:[%s6 + $0x60] sm:$0xff] %vm379, %v375
    %393 = vst.msk [vmem:[%s6 + $0x68] sm:$0xff] %vm379, %v376
    %394 = vst.msk [vmem:[%s6 + $0x70] sm:$0xff] %vm379, %v377
    %395 = vst.msk [vmem:[%s6 + $0x78] sm:$0xff] %vm379, %v378
    // Predicated region
    $region30: #{tpu_custom_call.1} parent=1 // pred_check
      _
    $region31: #{tpu_custom_call.1} parent=1 // pred_check_branch
      %397 = sbr.rel (0) target = $region33
    $region32: #{tpu_custom_call.1} parent=1 // pred_region
      %s399 = ssub.s32 2048, 2048
      %400 = vsyncadd [#allocation5], %s399
      %s401 = sshll.u32 [#allocation8], 4
      %s402 = int_to_ptr.vmem [resolvable:$true] %s401
      %407 = dma.vmem_to_hbm [thread:$0]  %s402, 2048, %s5, [#allocation5], 128, 128, 8
    $region33: #{tpu_custom_call.1} parent=1 // pred_fallthru
      _
    // Predicated region
    $region34: #{tpu_custom_call.1} parent=1 // pred_check
      _
    $region35: #{tpu_custom_call.1} parent=1 // pred_check_branch
      %409 = sbr.rel (0) target = $region37
    $region36: #{tpu_custom_call.1} parent=1 // pred_region
      _
    $region37: #{tpu_custom_call.1} parent=1 // pred_fallthru
      _
    // Predicated region
    $region38: #{tpu_custom_call.1} parent=1 // pred_check
      _
    $region39: #{tpu_custom_call.1} parent=1 // pred_check_branch
      %411 = sbr.rel (0) target = $region41
    $region40: #{tpu_custom_call.1} parent=1 // pred_region
      %412 = dma.done [#allocation5], 2048
    $region41: #{tpu_custom_call.1} parent=1 // pred_fallthru
      _
    // Predicated region
    $region42: #{tpu_custom_call.1} parent=1 // pred_check
      _
    $region43: #{tpu_custom_call.1} parent=1 // pred_check_branch
      %414 = sbr.rel (0) target = $region45
    $region44: #{tpu_custom_call.1} parent=1 // pred_region
      _
    $region45: #{tpu_custom_call.1} parent=1 // pred_fallthru
      _
    %415 = vsyncpa [#allocation4], 1
    %416 = vsyncpa [#allocation7], 1
    %417 = vsyncpa [#allocation5], 1

</llo_original>
